<compile_context>
chip_gen: v7x
topology: tpu7x:2x2x1
jax: 0.10.0
libtpu: 0.0.40
codegen_flags: <defaults>
</compile_context>

<pallas_src>
import functools

import jax
import jax.numpy as jnp
from jax import lax
from jax.experimental import pallas as pl
from jax.experimental.pallas import tpu as pltpu

LANE = 128
SUB = 8
ALIGN = SUB * LANE            # 1024 elements: zero-copy slab granularity
MAX_CHUNK_ROWS = 64           # in-kernel accumulation chunk (64x128 f32 = 8 vregs)
MIN_SPLIT_ROWS = 512          # split grid in two once rows >= 2*this (v7x megacore)
VMEM_LIMIT_BYTES = 32 * 1024 * 1024   # <= physical VMEM on every generation


# ----------------------------------------------------------------------------
# Elementwise loss (shared by kernels and the tiny-tail jnp path)
# ----------------------------------------------------------------------------
def _int_pow(x, n):
    """x ** n for a static non-negative Python int n, via VPU multiplies."""
    if n == 0:
        return jnp.ones_like(x)
    acc = None
    base = x
    while n > 0:
        if n & 1:
            acc = base if acc is None else acc * base
        n >>= 1
        if n:
            base = base * base
    return acc


def _pow(x, e):
    e = float(e)
    if e.is_integer() and e >= 0:
        return _int_pow(x, int(e))
    return x ** e  # non-integer exponent fallback (EUP exp/log)


def _gfl_elementwise(p, t, alpha, gamma):
    """Fused single-log form of the gaussian focal loss.

    pos (t==1): -log(p   + eps) * (1-p)^alpha
    neg (t!=1): -log(1-p + eps) * p^alpha * (1-t)^gamma
    The two terms are mutually exclusive, so one log suffices (selects on the
    4-slot VALU, one transcendental on the single-slot EUP).
    """
    eps = 1e-12
    is_pos = t == 1.0
    x = jnp.where(is_pos, p, 1.0 - p)
    w = jnp.where(is_pos, _pow(1.0 - p, alpha),
                  _pow(p, alpha) * _pow(1.0 - t, gamma))
    return -jnp.log(x + eps) * w


# ----------------------------------------------------------------------------
# Kernels
# ----------------------------------------------------------------------------
def _gfl_sum_kernel(pred_ref, tgt_ref, psum_ref, *, alpha, gamma,
                    rows, tile_r, chunk, needs_mask):
    """Per-grid-step (8,128) f32 partial sum, streaming the block in chunks."""

    def chunk_partial(start, keep_rows=None):
        p = pred_ref[pl.ds(start, chunk), :].astype(jnp.float32)
        t = tgt_ref[pl.ds(start, chunk), :].astype(jnp.float32)
        loss = _gfl_elementwise(p, t, alpha, gamma)
        if keep_rows is not None:
            # select (not multiply) so NaN/Inf from garbage rows is squashed
            rid = lax.broadcasted_iota(jnp.int32, loss.shape, 0)
            loss = jnp.where(rid < keep_rows, loss, 0.0)
        part = loss[0:SUB, :]
        for r in range(1, chunk // SUB):
            part = part + loss[r * SUB:(r + 1) * SUB, :]
        return part

    def body(c, acc):
        start = pl.multiple_of(c * chunk, chunk)
        return acc + chunk_partial(start)

    zero = jnp.zeros((SUB, LANE), jnp.float32)

    if not needs_mask:
        # rows % tile_r == 0: every block is full -> no masking anywhere.
        psum_ref[...] = lax.fori_loop(0, tile_r // chunk, body, zero)
    else:
        # Last block may be partial: accumulate the fully-valid chunks
        # unmasked, then one masked remainder chunk only when needed.
        valid = jnp.minimum(rows - pl.program_id(0) * tile_r, tile_r)
        n_full = valid // chunk
        psum_ref[...] = lax.fori_loop(0, n_full, body, zero)
        rem = valid - n_full * chunk  # multiple of SUB, 0..chunk-SUB

        @pl.when(rem > 0)
        def _():
            start = pl.multiple_of(n_full * chunk, chunk)
            psum_ref[...] = psum_ref[...] + chunk_partial(start, rem)


def _gfl_map_kernel(pred_ref, tgt_ref, loss_ref, *, alpha, gamma,
                    loss_weight, tile_r, chunk):
    """Elementwise loss map (reduction='none'), written chunk by chunk."""

    def body(c, carry):
        start = pl.multiple_of(c * chunk, chunk)
        p = pred_ref[pl.ds(start, chunk), :].astype(jnp.float32)
        t = tgt_ref[pl.ds(start, chunk), :].astype(jnp.float32)
        loss = _gfl_elementwise(p, t, alpha, gamma)
        if loss_weight != 1.0:          # static fold of loss_weight
            loss = loss * loss_weight
        loss_ref[pl.ds(start, chunk), :] = loss.astype(loss_ref.dtype)
        return carry

    lax.fori_loop(0, tile_r // chunk, body, jnp.int32(0))


# ----------------------------------------------------------------------------
# Wrapper
# ----------------------------------------------------------------------------
def _round_up(x, m):
    return ((x + m - 1) // m) * m


def _choose_tile(rows, max_tile_rows):
    """Pick (tile_r, chunk): big lane/sublane-fat blocks, chunk | tile_r."""
    max_tile_rows = max(SUB, (int(max_tile_rows) // SUB) * SUB)
    if rows > max_tile_rows:
        tile_r = max_tile_rows
    elif rows >= 2 * MIN_SPLIT_ROWS:
        # Split into >=2 grid steps so the 'parallel' axis can span both
        # TensorCores on v7x even when the whole slab fits one block.
        tile_r = min(_round_up(pl.cdiv(rows, 2), MAX_CHUNK_ROWS), max_tile_rows)
    else:
        tile_r = rows
    # Largest chunk <= MAX_CHUNK_ROWS, multiple of SUB, dividing tile_r.
    chunk = SUB
    for d in range(MAX_CHUNK_ROWS, SUB - 1, -SUB):
        if tile_r % d == 0:
            chunk = d
            break
    return tile_r, chunk


def _slab(x, head_n):
    """Lane-dense (rows, 128) view of the 1024-aligned head (zero-copy when
    the whole array is aligned)."""
    flat = x.reshape(-1)
    if head_n != flat.shape[0]:
        flat = flat[:head_n]
    return flat.reshape(head_n // LANE, LANE)


def gaussian_focal_loss_pallas(pred, target, *, alpha=2.0, gamma=4.0,
                               reduction="mean", loss_weight=1.0,
                               max_tile_rows=4096):
    """Equivalent of GaussianFocalLoss(alpha, gamma, reduction, loss_weight)
    .forward(pred, target) with weight=None, avg_factor=None."""
    assert pred.shape == target.shape
    assert reduction in ("none", "mean", "sum")
    # TODO(synk): per-element `weight` / `avg_factor` (mmdet weighted_loss
    # extras) are not implemented; only the weight=None, avg_factor=None path.

    orig_shape = pred.shape
    orig_dtype = pred.dtype
    alpha = float(alpha)
    gamma = float(gamma)
    loss_weight = float(loss_weight)
    n = int(pred.size)

    head_n = (n // ALIGN) * ALIGN     # 8x128-aligned head, handled by the kernel
    tail_n = n - head_n               # < 1024 leftover elements, plain jnp
    rows = head_n // LANE

    tail_loss = None
    if tail_n:
        p_t = pred.reshape(-1)[head_n:].astype(jnp.float32)
        t_t = target.reshape(-1)[head_n:].astype(jnp.float32)
        tail_loss = _gfl_elementwise(p_t, t_t, alpha, gamma)

    cparams = pltpu.CompilerParams(dimension_semantics=("parallel",),
                                   vmem_limit_bytes=VMEM_LIMIT_BYTES)

    if reduction == "none":
        pieces = []
        if rows:
            tile_r, chunk = _choose_tile(rows, max_tile_rows)
            grid = (pl.cdiv(rows, tile_r),)
            kernel = functools.partial(
                _gfl_map_kernel, alpha=alpha, gamma=gamma,
                loss_weight=loss_weight, tile_r=tile_r, chunk=chunk)
            loss2d = pl.pallas_call(
                kernel,
                out_shape=jax.ShapeDtypeStruct((rows, LANE), orig_dtype),
                grid_spec=pltpu.PrefetchScalarGridSpec(
                    num_scalar_prefetch=0,
                    grid=grid,
                    in_specs=[pl.BlockSpec((tile_r, LANE), lambda i: (i, 0)),
                              pl.BlockSpec((tile_r, LANE), lambda i: (i, 0))],
                    out_specs=pl.BlockSpec((tile_r, LANE), lambda i: (i, 0)),
                ),
                compiler_params=cparams,
            )(_slab(pred, head_n), _slab(target, head_n))
            pieces.append(loss2d.reshape(-1))
        if tail_loss is not None:
            pieces.append((tail_loss * loss_weight).astype(orig_dtype))
        out = pieces[0] if len(pieces) == 1 else jnp.concatenate(pieces)
        return out.reshape(orig_shape).astype(orig_dtype)

    # reduction == 'mean' or 'sum': only tiny (8,128) partial sums leave the
    # kernel; the final reduce is a trivial XLA op.
    total = jnp.float32(0.0)
    if rows:
        tile_r, chunk = _choose_tile(rows, max_tile_rows)
        grid = (pl.cdiv(rows, tile_r),)
        needs_mask = (rows % tile_r) != 0
        kernel = functools.partial(
            _gfl_sum_kernel, alpha=alpha, gamma=gamma,
            rows=rows, tile_r=tile_r, chunk=chunk, needs_mask=needs_mask)
        partials = pl.pallas_call(
            kernel,
            out_shape=jax.ShapeDtypeStruct((grid[0], SUB, LANE), jnp.float32),
            grid_spec=pltpu.PrefetchScalarGridSpec(
                num_scalar_prefetch=0,
                grid=grid,
                in_specs=[pl.BlockSpec((tile_r, LANE), lambda i: (i, 0)),
                          pl.BlockSpec((tile_r, LANE), lambda i: (i, 0))],
                out_specs=pl.BlockSpec((None, SUB, LANE), lambda i: (i, 0, 0)),
            ),
            compiler_params=cparams,
        )(_slab(pred, head_n), _slab(target, head_n))
        total = total + jnp.sum(partials)
    if tail_loss is not None:
        total = total + jnp.sum(tail_loss)

    if reduction == "mean":
        total = total / jnp.float32(n)
    return (total * jnp.float32(loss_weight)).astype(orig_dtype)


# ----------------------------------------------------------------------------
# Reference + tests
# ----------------------------------------------------------------------------
def _reference(pred, target, alpha=2.0, gamma=4.0, reduction="mean",
               loss_weight=1.0):
    eps = 1e-12
    pred = pred.astype(jnp.float32)
    target = target.astype(jnp.float32)
    pos_w = (target == 1.0).astype(jnp.float32)
    neg_w = (1.0 - target) ** gamma
    pos_loss = -jnp.log(pred + eps) * (1.0 - pred) ** alpha * pos_w
    neg_loss = -jnp.log(1.0 - pred + eps) * pred ** alpha * neg_w
    loss = pos_loss + neg_loss
    if reduction == "mean":
        loss = loss.mean()
    elif reduction == "sum":
        loss = loss.sum()
    return loss_weight * loss


def _make_inputs(key, shape):
    k1, k2 = jax.random.split(key)
    pred = jax.nn.sigmoid(jax.random.normal(k1, shape, jnp.float32))
    target = jax.random.uniform(k2, shape, jnp.float32)
    # a few exact-1 gaussian peaks
    target = target.at[..., 0].set(1.0)
    target = target.at[..., -1, 1].set(1.0)
    return pred, target


if __name__ == "__main__":
    key = jax.random.PRNGKey(0)
    keys = jax.random.split(key, 5)
    failures = []

    def check(name, out, ref):
        out = jax.block_until_ready(out)
        if not bool(jnp.allclose(out, ref, rtol=5e-4, atol=1e-6)):
            failures.append(name)

    # Case 1: aligned NCHW heatmap (zero-copy slab), all reductions.
    pred, target = _make_inputs(keys[0], (2, 4, 16, 16))
    for red in ("mean", "sum", "none"):
        check(f"aligned/{red}",
              gaussian_focal_loss_pallas(pred, target, reduction=red),
              _reference(pred, target, reduction=red))

    # Case 2: ragged size -> aligned head kernel + tiny jnp tail + loss_weight.
    pred, target = _make_inputs(keys[1], (3, 5, 7, 11))
    for red in ("mean", "sum", "none"):
        check(f"ragged/{red}",
              gaussian_focal_loss_pallas(pred, target, reduction=red,
                                         loss_weight=0.5),
              _reference(pred, target, reduction=red, loss_weight=0.5))

    # Case 3: partial last grid block (rows=24, tile_r=16) -> masked sum path.
    pred, target = _make_inputs(keys[2], (2, 3, 16, 32))
    for red in ("mean", "sum", "none"):
        check(f"partial/{red}",
              gaussian_focal_loss_pallas(pred, target, reduction=red,
                                         max_tile_rows=16),
              _reference(pred, target, reduction=red))

    # Case 4: rows=1024 -> grid split in two (megacore) + multi-chunk fori.
    pred, target = _make_inputs(keys[3], (4, 8, 64, 64))
    for red in ("mean", "none"):
        check(f"split/{red}",
              gaussian_focal_loss_pallas(pred, target, reduction=red),
              _reference(pred, target, reduction=red))

    # Case 5: rows=240, tile_r=128 -> full chunks + masked remainder chunk.
    pred, target = _make_inputs(keys[4], (2, 3, 40, 128))
    for red in ("mean", "sum"):
        check(f"chunk_tail/{red}",
              gaussian_focal_loss_pallas(pred, target, reduction=red,
                                         max_tile_rows=128),
              _reference(pred, target, reduction=red))

    if failures:
        print("MISMATCH: " + ", ".join(failures))
    else:
        print("KERNEL_OK")
</pallas_src>

<mosaic_0001>
module attributes {stable_mosaic.version = 11 : i64} {
  func.func @_gfl_sum_kernel(%arg0: i32, %arg1: memref<16x128xf32, #tpu.memory_space<vmem>>, %arg2: memref<16x128xf32, #tpu.memory_space<vmem>>, %arg3: memref<1x8x128xf32, #tpu.memory_space<vmem>>) attributes {dimension_semantics = [#tpu.dimension_semantics<parallel>], iteration_bounds = array<i64: 1>, scalar_prefetch = 0 : i64, scratch_operands = 0 : i64, tpu.core_type = #tpu.core_type<tc>, window_params = [{transform_indices = @transform_0, window_bounds = array<i64: 16, 128>}, {transform_indices = @transform_1, window_bounds = array<i64: 16, 128>}, {transform_indices = @transform_2, window_bounds = array<i64: 1, 8, 128>}]} {
    %cst = arith.constant 0.000000e+00 : f32
    %0 = vector.broadcast %cst : f32 to vector<8x128xf32>
    %c0_i32 = arith.constant 0 : i32
    %c16_i32 = arith.constant 16 : i32
    %1 = arith.muli %c0_i32, %c16_i32 : i32
    %2 = tpu.assume_multiple %1, 16 : i32
    %3 = arith.index_cast %2 : i32 to index
    %c0 = arith.constant 0 : index
    %4 = vector.load %arg1[%3, %c0] : memref<16x128xf32, #tpu.memory_space<vmem>>, vector<16x128xf32>
    %5 = arith.index_cast %2 : i32 to index
    %c0_0 = arith.constant 0 : index
    %6 = vector.load %arg2[%5, %c0_0] : memref<16x128xf32, #tpu.memory_space<vmem>>, vector<16x128xf32>
    %cst_1 = arith.constant 1.000000e+00 : f32
    %7 = vector.broadcast %cst_1 : f32 to vector<16x128xf32>
    %8 = arith.cmpf oeq, %6, %7 : vector<16x128xf32>
    %cst_2 = arith.constant 1.000000e+00 : f32
    %9 = vector.broadcast %cst_2 : f32 to vector<16x128xf32>
    %10 = arith.subf %9, %4 : vector<16x128xf32>
    %11 = arith.select %8, %4, %10 : vector<16x128xi1>, vector<16x128xf32>
    %cst_3 = arith.constant 1.000000e+00 : f32
    %12 = vector.broadcast %cst_3 : f32 to vector<16x128xf32>
    %13 = arith.subf %12, %4 : vector<16x128xf32>
    %14 = arith.mulf %13, %13 : vector<16x128xf32>
    %15 = arith.mulf %4, %4 : vector<16x128xf32>
    %cst_4 = arith.constant 1.000000e+00 : f32
    %16 = vector.broadcast %cst_4 : f32 to vector<16x128xf32>
    %17 = arith.subf %16, %6 : vector<16x128xf32>
    %18 = arith.mulf %17, %17 : vector<16x128xf32>
    %19 = arith.mulf %18, %18 : vector<16x128xf32>
    %20 = arith.mulf %15, %19 : vector<16x128xf32>
    %21 = arith.select %8, %14, %20 : vector<16x128xi1>, vector<16x128xf32>
    %cst_5 = arith.constant 9.99999996E-13 : f32
    %22 = vector.broadcast %cst_5 : f32 to vector<16x128xf32>
    %23 = arith.addf %11, %22 : vector<16x128xf32>
    %24 = math.log %23 : vector<16x128xf32>
    %cst_6 = arith.constant 0.000000e+00 : f32
    %25 = vector.broadcast %cst_6 : f32 to vector<16x128xf32>
    %26 = arith.subf %25, %24 : vector<16x128xf32>
    %27 = arith.mulf %26, %21 : vector<16x128xf32>
    %28 = vector.extract_strided_slice %27 {offsets = [0, 0], sizes = [8, 128], strides = [1, 1]} : vector<16x128xf32> to vector<8x128xf32>
    %29 = vector.extract_strided_slice %27 {offsets = [8, 0], sizes = [8, 128], strides = [1, 1]} : vector<16x128xf32> to vector<8x128xf32>
    %30 = arith.addf %28, %29 : vector<8x128xf32>
    %31 = arith.addf %0, %30 : vector<8x128xf32>
    %c1_i32 = arith.constant 1 : i32
    %c0_7 = arith.constant 0 : index
    %c0_8 = arith.constant 0 : index
    %c0_9 = arith.constant 0 : index
    %32 = vector.load %arg3[%c0_7, %c0_8, %c0_9] : memref<1x8x128xf32, #tpu.memory_space<vmem>>, vector<1x8x128xf32>
    %33 = vector.shape_cast %32 : vector<1x8x128xf32> to vector<8x128xf32>
    %34 = vector.shape_cast %31 : vector<8x128xf32> to vector<1x8x128xf32>
    tpu.vector_store %arg3[%c0_7, %c0_8, %c0_9], %34 {strides = array<i32>} : memref<1x8x128xf32, #tpu.memory_space<vmem>>, vector<1x8x128xf32>,
    return
  }
  func.func @transform_0(%arg0: i32) -> (i32, i32) {
    %c0_i32 = arith.constant 0 : i32
    %c0_i32_0 = arith.constant 0 : i32
    return %arg0, %c0_i32 : i32, i32
  }
  func.func @transform_1(%arg0: i32) -> (i32, i32) {
    %c0_i32 = arith.constant 0 : i32
    %c0_i32_0 = arith.constant 0 : i32
    return %arg0, %c0_i32 : i32, i32
  }
  func.func @transform_2(%arg0: i32) -> (i32, i32, i32) {
    %c0_i32 = arith.constant 0 : i32
    %c0_i32_0 = arith.constant 0 : i32
    %c0_i32_1 = arith.constant 0 : i32
    return %arg0, %c0_i32, %c0_i32_0 : i32, i32, i32
  }
}

</mosaic_0001>

<llo_original>
// kernel: tpu_custom_call.1
$region0: #{tpu_custom_call.1}
  #allocation0 [shape = 'u32[]', space=smem, size = 0x4, offset = 0x4, fixed_abs, tag = 'smem constant byte address 0x4 - core index']
  #allocation1 [shape = 'u32[144,128]{1,0:T(1,128)}', space=vmem, size = 0x12000, scoped, tag = 'internal scratch']
  %s0 = inlined_call_operand.hbm [shape: f32[16,128], index: 0, kind: input, shape index: {}]
  %s1 = inlined_call_operand.hbm [shape: f32[16,128], index: 1, kind: input, shape index: {}]
  %s2 = inlined_call_operand.hbm [shape: f32[1,8,128], index: 2, kind: output, shape index: {}]
  %s3 = sld [smem:[#allocation0]]
  $region26: #{tpu_custom_call.1} parent=0
    _
  %s5 = ssub.s32 1, %s3
  %s6 = scalar_select 0, %s5, %s3
  $region1: #{tpu_custom_call.1} parent=0
    #allocation2 [shape = 'u8[8192]{0}', space=vmem, size = 0x2000, scoped, tag = 'input window, operand 0, single buffered']
    #allocation3 [shape = 's32[1]{0}', space=sflag, size = 0x4, scoped, tag = 'scoped memory for tpu_custom_call.1']
    #allocation4 [shape = 's32[1]{0}', space=sflag, size = 0x4, scoped, tag = 'scoped memory for tpu_custom_call.1']
    #allocation5 [shape = 'u8[8192]{0}', space=vmem, size = 0x2000, scoped, tag = 'input window, operand 1, single buffered']
    #allocation6 [shape = 's32[1]{0}', space=sflag, size = 0x4, scoped, tag = 'scoped memory for tpu_custom_call.1']
    #allocation7 [shape = 'u8[4096]{0}', space=vmem, size = 0x1000, scoped, tag = 'output window, operand 0, single buffered']
    %7 = vsyncpa [#allocation3], 0
    %8 = vsyncpa [#allocation6], 0
    %9 = vsyncpa [#allocation4], 0
    // Predicated region
    $region2: #{tpu_custom_call.1} parent=1 // pred_check
      _
    $region3: #{tpu_custom_call.1} parent=1 // pred_check_branch
      %11 = sbr.rel (0) target = $region5
    $region4: #{tpu_custom_call.1} parent=1 // pred_region
      %s13 = ssub.s32 256, 256
      %14 = vsyncadd [#allocation3], %s13
      %s15 = sshll.u32 [#allocation2], 4
      %s16 = int_to_ptr.vmem [resolvable:$true] %s15
      %21 = dma.hbm_to_vmem [thread:$0]  %s0, 256, %s16, [#allocation3], 128, 128, 8
    $region5: #{tpu_custom_call.1} parent=1 // pred_fallthru
      _
    // Predicated region
    $region6: #{tpu_custom_call.1} parent=1 // pred_check
      _
    $region7: #{tpu_custom_call.1} parent=1 // pred_check_branch
      %23 = sbr.rel (0) target = $region9
    $region8: #{tpu_custom_call.1} parent=1 // pred_region
      %s25 = ssub.s32 256, 256
      %26 = vsyncadd [#allocation6], %s25
      %s27 = sshll.u32 [#allocation5], 4
      %s28 = int_to_ptr.vmem [resolvable:$true] %s27
      %33 = dma.hbm_to_vmem [thread:$0]  %s1, 256, %s28, [#allocation6], 128, 128, 8
    $region9: #{tpu_custom_call.1} parent=1 // pred_fallthru
      _
    // Predicated region
    $region10: #{tpu_custom_call.1} parent=1 // pred_check
      _
    $region11: #{tpu_custom_call.1} parent=1 // pred_check_branch
      %35 = sbr.rel (0) target = $region13
    $region12: #{tpu_custom_call.1} parent=1 // pred_region
      %36 = dma.done [#allocation3], 256
    $region13: #{tpu_custom_call.1} parent=1 // pred_fallthru
      _
    // Predicated region
    $region14: #{tpu_custom_call.1} parent=1 // pred_check
      _
    $region15: #{tpu_custom_call.1} parent=1 // pred_check_branch
      %38 = sbr.rel (0) target = $region17
    $region16: #{tpu_custom_call.1} parent=1 // pred_region
      %39 = dma.done [#allocation6], 256
    $region17: #{tpu_custom_call.1} parent=1 // pred_fallthru
      _
    %v40 = vld [vmem:[#allocation2] sm:$0xff]
    %v41 = vld [vmem:[#allocation2 + $0x8] sm:$0xff]
    %v42 = vld [vmem:[#allocation5] sm:$0xff]
    %v43 = vld [vmem:[#allocation5 + $0x8] sm:$0xff]
    %vm44 = vcmp.eq.f32.partialorder %v42, 1.0
    %vm45 = vcmp.eq.f32.partialorder %v43, 1.0
    %v46 = vsub.f32 1.0, %v40
    %v47 = vsub.f32 1.0, %v41
    %v48 = vsel %vm44, %v40, %v46
    %v49 = vsel %vm45, %v41, %v47
    %v50 = vmul.f32 %v46, %v46
    %v51 = vmul.f32 %v47, %v47
    %v52 = vmul.f32 %v40, %v40
    %v53 = vmul.f32 %v41, %v41
    %v54 = vsub.f32 1.0, %v42
    %v55 = vsub.f32 1.0, %v43
    %v56 = vmul.f32 %v54, %v54
    %v57 = vmul.f32 %v55, %v55
    %v58 = vmul.f32 %v56, %v56
    %v59 = vmul.f32 %v57, %v57
    %v60 = vmul.f32 %v52, %v58
    %v61 = vmul.f32 %v53, %v59
    %v62 = vsel %vm44, %v50, %v60
    %v63 = vsel %vm45, %v51, %v61
    %v64 = vadd.f32 %v48, 1e-12
    %v65 = vadd.f32 %v49, 1e-12
    %v66 = vlog2.pop %v64
    %v67 = vmul.f32 %v66, 0.6931472
    %v68 = vlog2.pop %v65
    %v69 = vmul.f32 %v68, 0.6931472
    %v70 = vsub.f32 0.0, %v67
    %v71 = vsub.f32 0.0, %v69
    %v72 = vmul.f32 %v70, %v62
    %v73 = vmul.f32 %v71, %v63
    %v74 = vadd.f32 %v72, %v73
    %v75 = vadd.f32 %v74, 0.0
    %76 = vst [vmem:[#allocation7] sm:$0xff] %v75
    // Predicated region
    $region18: #{tpu_custom_call.1} parent=1 // pred_check
      _
    $region19: #{tpu_custom_call.1} parent=1 // pred_check_branch
      %78 = sbr.rel (0) target = $region21
    $region20: #{tpu_custom_call.1} parent=1 // pred_region
      %s80 = ssub.s32 128, 128
      %81 = vsyncadd [#allocation4], %s80
      %s83 = sshll.u32 [#allocation7], 4
      %s84 = int_to_ptr.vmem [resolvable:$true] %s83
      %86 = dma.vmem_to_hbm [thread:$0]  %s84, 128, %s2, [#allocation4]
    $region21: #{tpu_custom_call.1} parent=1 // pred_fallthru
      _
    // Predicated region
    $region22: #{tpu_custom_call.1} parent=1 // pred_check
      _
    $region23: #{tpu_custom_call.1} parent=1 // pred_check_branch
      %88 = sbr.rel (0) target = $region25
    $region24: #{tpu_custom_call.1} parent=1 // pred_region
      %89 = dma.done [#allocation4], 128
    $region25: #{tpu_custom_call.1} parent=1 // pred_fallthru
      _
    %90 = vsyncpa [#allocation3], 1
    %91 = vsyncpa [#allocation6], 1
    %92 = vsyncpa [#allocation4], 1

</llo_original>
